<compile_context>
chip_gen: v7x
topology: tpu7x:2x2x1
jax: 0.10.0
libtpu: 0.0.40
codegen_flags: <defaults>
</compile_context>

<pallas_src>
from itertools import combinations_with_replacement
from math import comb

import numpy as np
import jax
import jax.numpy as jnp
from jax.experimental import pallas as pl
from jax.experimental.pallas import tpu as pltpu


# ----------------------------- tiling helpers -------------------------------
def _round_up(x, m):
    return ((x + m - 1) // m) * m


def _pad_dim(d):
    """Pad the veronese dimension: 128 for tiny problems, 256-aligned above
    (keeps the MXU M/K dims at or above native width on v6e/v7x)."""
    return 128 if d <= 128 else _round_up(d, 256)


def _vmem_capacity_bytes():
    try:
        cap = getattr(pltpu.get_tpu_info(), "vmem_capacity_bytes", None)
        if cap:
            return int(cap)
    except Exception:
        pass
    return 64 * 1024 * 1024  # conservative: v7x per-TensorCore VMEM


def _vmem_bytes(tile_d, tile_k, tile_bs):
    # f32 working set: double-buffered A / V / out tiles + Y partial + acc.
    return 4 * (2 * tile_d * tile_k        # A tile (double-buffered)
                + 2 * tile_k * tile_bs     # V tile (double-buffered)
                + 2 * tile_bs              # out tile (double-buffered)
                + tile_d * tile_bs         # Y partial / MXU result tile
                + tile_bs)                 # column-norm accumulator


def _largest_tile(total, cap):
    """Largest multiple-of-128 divisor of `total` that is <= cap."""
    cap = min(cap, total)
    cap -= cap % 128
    for cand in range(cap, 127, -128):
        if total % cand == 0:
            return cand
    return 128


def _shrink_tile(total, cur):
    """Next smaller multiple-of-128 divisor of `total` below `cur`."""
    for cand in range(cur - 128, 127, -128):
        if total % cand == 0:
            return cand
    return 128


def _select_tiles(d_pad, bs_pad, budget, tile_bs_max=512, tile_d_max=512):
    tile_bs = _largest_tile(bs_pad, tile_bs_max)
    # keep >= 2 batch tiles when possible so both v7x TensorCores get work
    if bs_pad // tile_bs < 2 and bs_pad >= 256:
        tile_bs = _largest_tile(bs_pad, bs_pad // 2)
    tile_d = _largest_tile(d_pad, tile_d_max)
    tile_k = d_pad  # single contraction step when the working set fits VMEM
    # Shrink until the double-buffered working set fits the per-generation
    # budget: K first (doesn't hurt MXU M/N), then the batch tile, then D.
    while _vmem_bytes(tile_d, tile_k, tile_bs) > budget:
        if tile_k > 128:
            tile_k = _shrink_tile(d_pad, tile_k)
        elif tile_bs > 128:
            tile_bs = _shrink_tile(bs_pad, tile_bs)
        elif tile_d > 128:
            tile_d = _shrink_tile(d_pad, tile_d)
        else:
            break  # all-128 working set (~0.6 MiB) always fits
    return tile_d, tile_k, tile_bs


# ------------------------------ Pallas kernels -------------------------------
def _qpsd_kernel_single_k(a_ref, v_ref, o_ref, acc_ref):
    """Grid (batch tile i, A row-tile d); contraction spans the whole block."""
    d = pl.program_id(1)

    @pl.when(d == 0)
    def _():
        acc_ref[...] = jnp.zeros_like(acc_ref)

    # Y = A_rows @ V -> (tile_d, tile_bs) on the MXU, f32 accumulation.
    y = jnp.dot(a_ref[...], v_ref[...], preferred_element_type=jnp.float32)
    # v^T A^T A v per batch column == column-wise squared norm of Y,
    # additive over A row-tiles (VALU/XLU filler under the MXU stream).
    acc_ref[...] += jnp.sum(y * y, axis=0, keepdims=True)

    @pl.when(d == pl.num_programs(1) - 1)
    def _():
        o_ref[...] = acc_ref[...].astype(o_ref.dtype)


def _qpsd_kernel_ktiled(a_ref, v_ref, o_ref, y_ref, acc_ref):
    """Grid (batch tile i, A row-tile d, contraction tile k) -- bounds VMEM
    independent of dim_veronese (needed for v7x's 64 MiB at large D)."""
    d = pl.program_id(1)
    k = pl.program_id(2)
    n_d = pl.num_programs(1)
    n_k = pl.num_programs(2)

    @pl.when((d == 0) & (k == 0))
    def _():
        acc_ref[...] = jnp.zeros_like(acc_ref)

    part = jnp.dot(a_ref[...], v_ref[...], preferred_element_type=jnp.float32)

    @pl.when(k == 0)
    def _():
        y_ref[...] = part

    @pl.when(k > 0)
    def _():
        y_ref[...] += part

    @pl.when(k == n_k - 1)
    def _():
        y = y_ref[...]
        acc_ref[...] += jnp.sum(y * y, axis=0, keepdims=True)

    @pl.when((d == n_d - 1) & (k == n_k - 1))
    def _():
        o_ref[...] = acc_ref[...].astype(o_ref.dtype)


# --------------------------------- wrapper -----------------------------------
def bilinear_ata_pallas(A_p, V, *, force_pallas=False, vmem_budget_bytes=None,
                        tile_bs_max=512, tile_d_max=512):
    """out[b] = v_b^T A^T A v_b for every column v_b of V.

    A_p: (d_pad, d_pad) zero-padded float32 parameter (cache it at init!).
    V:   (D, BS) with D <= d_pad.   Returns (BS, 1) float32.
    """
    D, BS = V.shape
    d_pad = A_p.shape[0]
    assert A_p.shape == (d_pad, d_pad) and d_pad >= D and d_pad % 128 == 0

    bs_pad = _round_up(max(BS, 1), 128)

    # Tiny problems: the MXU has no real work and grid-step overhead dominates.
    if not force_pallas and d_pad * bs_pad < 262_144:
        y = jnp.dot(A_p[:, :D], V.astype(jnp.float32),
                    preferred_element_type=jnp.float32)
        return jnp.sum(y * y, axis=0)[:, None]

    cap = _vmem_capacity_bytes()
    budget = (cap * 3) // 4 if vmem_budget_bytes is None else int(vmem_budget_bytes)
    tile_d, tile_k, tile_bs = _select_tiles(
        d_pad, bs_pad, budget, tile_bs_max=tile_bs_max, tile_d_max=tile_d_max)
    n_i = bs_pad // tile_bs
    n_d = d_pad // tile_d
    n_k = d_pad // tile_k

    working_set = _vmem_bytes(tile_d, tile_k, tile_bs)
    vmem_limit = min(int(cap * 0.9),
                     max(2 * working_set + (8 << 20), 32 << 20))

    # Zero padding is exact for this quadratic form.
    # TODO(synk): for huge npoints, fuse the veronese monomial products into
    # the kernel (or emit V in bf16) to remove the f32 (dim_veronese, npoints)
    # HBM round-trip; bf16 A/V inputs are also an option if tolerance allows.
    V_p = jnp.zeros((d_pad, bs_pad), jnp.float32).at[:D, :BS].set(
        V.astype(jnp.float32))

    flops = 2 * d_pad * d_pad * bs_pad + 3 * d_pad * bs_pad

    if n_k == 1:
        cost = pl.CostEstimate(
            flops=flops, transcendentals=0,
            bytes_accessed=4 * (n_i * d_pad * d_pad + d_pad * bs_pad + bs_pad))
        out = pl.pallas_call(
            _qpsd_kernel_single_k,
            out_shape=jax.ShapeDtypeStruct((1, bs_pad), jnp.float32),
            grid_spec=pltpu.PrefetchScalarGridSpec(
                num_scalar_prefetch=0,
                grid=(n_i, n_d),
                in_specs=[
                    # A row-tile: re-streamed once per batch tile
                    pl.BlockSpec((tile_d, d_pad), lambda i, d: (d, 0)),
                    # V lane-tile: resident across d, double-buffered over i
                    pl.BlockSpec((d_pad, tile_bs), lambda i, d: (0, i)),
                ],
                out_specs=pl.BlockSpec((1, tile_bs), lambda i, d: (0, i)),
                scratch_shapes=[pltpu.VMEM((1, tile_bs), jnp.float32)],
            ),
            compiler_params=pltpu.CompilerParams(
                dimension_semantics=("parallel", "arbitrary"),
                vmem_limit_bytes=vmem_limit,
            ),
            cost_estimate=cost,
        )(A_p, V_p)
    else:
        cost = pl.CostEstimate(
            flops=flops, transcendentals=0,
            bytes_accessed=4 * (n_i * d_pad * d_pad
                                + n_d * d_pad * bs_pad + bs_pad))
        out = pl.pallas_call(
            _qpsd_kernel_ktiled,
            out_shape=jax.ShapeDtypeStruct((1, bs_pad), jnp.float32),
            grid_spec=pltpu.PrefetchScalarGridSpec(
                num_scalar_prefetch=0,
                grid=(n_i, n_d, n_k),
                in_specs=[
                    pl.BlockSpec((tile_d, tile_k), lambda i, d, k: (d, k)),
                    pl.BlockSpec((tile_k, tile_bs), lambda i, d, k: (k, i)),
                ],
                out_specs=pl.BlockSpec((1, tile_bs), lambda i, d, k: (0, i)),
                scratch_shapes=[pltpu.VMEM((tile_d, tile_bs), jnp.float32),
                                pltpu.VMEM((1, tile_bs), jnp.float32)],
            ),
            compiler_params=pltpu.CompilerParams(
                dimension_semantics=("parallel", "arbitrary", "arbitrary"),
                vmem_limit_bytes=vmem_limit,
            ),
            cost_estimate=cost,
        )(A_p, V_p)

    return out[0, :BS].reshape(BS, 1)


# --------------------------- veronese construction ---------------------------
def veronese_monomial_indices(dims, n):
    """Indices (into homogeneous coords [1, x_1..x_dims]) of every degree-n
    monomial.  Count = comb(dims + n, n) = dim_veronese."""
    return np.asarray(
        list(combinations_with_replacement(range(dims + 1), n)), dtype=np.int32)


def generate_veronese(x_dn, n, idx):
    """x_dn: (dims, npoints) -> v(x): (dim_veronese, npoints).

    Accumulates the degree-n monomial products as n successive
    (dim_veronese, npoints) multiplies (no (dim_veronese, n, npoints) gather).
    # TODO(synk): monomial ordering is a fixed permutation of the original
    # kron-based generate_veronese ordering; equivalent for a randomly
    # initialized A, not for weights ported from a torch checkpoint.
    """
    dims, npoints = x_dn.shape
    y = jnp.concatenate([jnp.ones((1, npoints), x_dn.dtype), x_dn], axis=0)
    v = y[idx[:, 0]]
    for j in range(1, idx.shape[1]):
        v = v * y[idx[:, j]]
    return v


def pad_parameter(A, d_pad):
    D = A.shape[0]
    return jnp.zeros((d_pad, d_pad), jnp.float32).at[:D, :D].set(
        A.astype(jnp.float32))


# ----------------------------------- module ----------------------------------
class QPSDPallas:
    """JAX/Pallas equivalent of Q_PSD(x_size, n)."""

    def __init__(self, x_size, n, key, *, force_pallas=False):
        self.n = n
        self.x_size = x_size
        self.dim_veronese = int(comb(x_size + n, n))
        self.idx = veronese_monomial_indices(x_size, n)
        assert self.idx.shape[0] == self.dim_veronese
        # torch.rand(d, d) -> uniform [0, 1), deterministic via key
        self.A = jax.random.uniform(
            key, (self.dim_veronese, self.dim_veronese), dtype=jnp.float32)
        # padded parameter cached once (A is fixed -> no per-call pad traffic)
        self.d_pad = _pad_dim(self.dim_veronese)
        self.A_p = pad_parameter(self.A, self.d_pad)
        self.force_pallas = force_pallas

    def __call__(self, x):
        npoints, dims = x.shape
        # TODO(synk): torch's x.view(dims, npoints) is a raw reshape; we use
        # the transpose (per-point veronese), matching the documented intent.
        v_x = generate_veronese(x.T, self.n, self.idx)   # (dim_veronese, npoints)
        return bilinear_ata_pallas(self.A_p, v_x,
                                   force_pallas=self.force_pallas)

    def get_norm_of_ATA(self):
        return jnp.trace(self.A.T @ self.A)


# ------------------------------------ demo ------------------------------------
if __name__ == "__main__":
    key = jax.random.PRNGKey(0)
    k_x1, k_x2, k_a1, k_a2, k_a3, k_v3 = jax.random.split(key, 6)

    def reference_f64(A, V):
        """float64 numpy ground truth for out[b] = v_b^T A^T A v_b."""
        A64 = np.asarray(A, np.float64)
        V64 = np.asarray(V, np.float64)
        y = A64 @ V64
        return (y * y).sum(axis=0)[:, None]

    # tolerances accommodate possible bf16 operand passes inside the MXU path
    RTOL, ATOL = 1e-2, 1e-3

    # 1) tiny case at module-spec shapes (force the Pallas path)
    npoints, dims, order = 8, 4, 2          # dim_veronese = comb(6, 2) = 15
    x1 = jax.random.normal(k_x1, (npoints, dims), dtype=jnp.float32)
    m1 = QPSDPallas(dims, order, k_a1, force_pallas=True)
    out1 = jax.block_until_ready(m1(x1))
    assert out1.shape == (npoints, 1)
    v1 = generate_veronese(x1.T, order, m1.idx)
    np.testing.assert_allclose(np.asarray(out1), reference_f64(m1.A, v1),
                               rtol=RTOL, atol=ATOL)
    # small-problem jnp fallback agrees with the kernel
    out1_fb = jax.block_until_ready(bilinear_ata_pallas(m1.A_p, v1))
    np.testing.assert_allclose(np.asarray(out1_fb), np.asarray(out1),
                               rtol=RTOL, atol=ATOL)

    # 2) multi-batch-tile case (3 tiles on the "parallel" axis, tile_d = 256)
    npoints, dims, order = 300, 9, 3        # dim_veronese = comb(12, 3) = 220
    x2 = jax.random.normal(k_x2, (npoints, dims), dtype=jnp.float32) * 0.5
    m2 = QPSDPallas(dims, order, k_a2, force_pallas=True)
    out2 = jax.block_until_ready(m2(x2))
    assert out2.shape == (npoints, 1)
    v2 = generate_veronese(x2.T, order, m2.idx)
    np.testing.assert_allclose(np.asarray(out2), reference_f64(m2.A, v2),
                               rtol=RTOL, atol=ATOL)

    # 3) contraction-tiled kernel (forced small VMEM budget -> n_k > 1)
    D3, BS3 = 640, 200
    A3 = jax.random.uniform(k_a3, (D3, D3), dtype=jnp.float32)
    V3 = jax.random.normal(k_v3, (D3, BS3), dtype=jnp.float32)
    A3_p = pad_parameter(A3, _pad_dim(D3))
    out3 = jax.block_until_ready(
        bilinear_ata_pallas(A3_p, V3, force_pallas=True,
                            vmem_budget_bytes=2 * 1024 * 1024))
    assert out3.shape == (BS3, 1)
    ref3 = reference_f64(A3, V3)
    np.testing.assert_allclose(np.asarray(out3), ref3,
                               rtol=RTOL, atol=1e-2)

    print("KERNEL_OK")
</pallas_src>

<mosaic_0001>
module attributes {stable_mosaic.version = 11 : i64} {
  func.func @_qpsd_kernel_single_k(%arg0: i32, %arg1: i32, %arg2: memref<128x128xf32, #tpu.memory_space<vmem>>, %arg3: memref<128x128xf32, #tpu.memory_space<vmem>>, %arg4: memref<1x128xf32, #tpu.memory_space<vmem>>, %arg5: memref<1x128xf32, #tpu.memory_space<vmem>>) attributes {dimension_semantics = [#tpu.dimension_semantics<parallel>, #tpu.dimension_semantics<arbitrary>], iteration_bounds = array<i64: 1, 1>, scalar_prefetch = 0 : i64, scratch_operands = 1 : i64, tpu.core_type = #tpu.core_type<tc>, window_params = [{transform_indices = @transform_0, window_bounds = array<i64: 128, 128>}, {transform_indices = @transform_1, window_bounds = array<i64: 128, 128>}, {transform_indices = @transform_2, window_bounds = array<i64: 1, 128>}]} {
    %c0_i32 = arith.constant 0 : i32
    %0 = arith.cmpi eq, %arg1, %c0_i32 : i32
    %1 = arith.extui %0 : i1 to i32
    %c0_i32_0 = arith.constant 0 : i32
    %2 = arith.cmpi ne, %1, %c0_i32_0 : i32
    scf.if %2 {
      %cst_11 = arith.constant 0.000000e+00 : f32
      %15 = vector.broadcast %cst_11 : f32 to vector<1x128xf32>
      %c0_12 = arith.constant 0 : index
      %c0_13 = arith.constant 0 : index
      %16 = vector.load %arg5[%c0_12, %c0_13] : memref<1x128xf32, #tpu.memory_space<vmem>>, vector<1x128xf32>
      tpu.vector_store %arg5[%c0_12, %c0_13], %15 {strides = array<i32>} : memref<1x128xf32, #tpu.memory_space<vmem>>, vector<1x128xf32>,
    } else {
    }
    %c0 = arith.constant 0 : index
    %c0_1 = arith.constant 0 : index
    %3 = vector.load %arg2[%c0, %c0_1] : memref<128x128xf32, #tpu.memory_space<vmem>>, vector<128x128xf32>
    %c0_2 = arith.constant 0 : index
    %c0_3 = arith.constant 0 : index
    %4 = vector.load %arg3[%c0_2, %c0_3] : memref<128x128xf32, #tpu.memory_space<vmem>>, vector<128x128xf32>
    %cst = arith.constant dense<0.000000e+00> : vector<128x128xf32>
    %5 = tpu.matmul %3, %4, %cst {dimension_numbers = #tpu.dot_dimension_numbers<[1], [0], [0], [1], [0, 0, 1, 1], [], []>} : vector<128x128xf32>, vector<128x128xf32>, vector<128x128xf32> -> vector<128x128xf32>
    %c0_4 = arith.constant 0 : index
    %c0_5 = arith.constant 0 : index
    %6 = vector.load %arg5[%c0_4, %c0_5] : memref<1x128xf32, #tpu.memory_space<vmem>>, vector<1x128xf32>
    %7 = arith.mulf %5, %5 : vector<128x128xf32>
    %cst_6 = arith.constant dense<0.000000e+00> : vector<128xf32>
    %8 = vector.multi_reduction <add>, %7, %cst_6 [0] : vector<128x128xf32> to vector<128xf32>
    %9 = vector.shape_cast %8 : vector<128xf32> to vector<1x128xf32>
    %10 = arith.addf %6, %9 : vector<1x128xf32>
    %c0_7 = arith.constant 0 : index
    %c0_8 = arith.constant 0 : index
    %11 = vector.load %arg5[%c0_7, %c0_8] : memref<1x128xf32, #tpu.memory_space<vmem>>, vector<1x128xf32>
    tpu.vector_store %arg5[%c0_7, %c0_8], %10 {strides = array<i32>} : memref<1x128xf32, #tpu.memory_space<vmem>>, vector<1x128xf32>,
    %c0_i32_9 = arith.constant 0 : i32
    %12 = arith.cmpi eq, %arg1, %c0_i32_9 : i32
    %13 = arith.extui %12 : i1 to i32
    %c0_i32_10 = arith.constant 0 : i32
    %14 = arith.cmpi ne, %13, %c0_i32_10 : i32
    scf.if %14 {
      %c0_11 = arith.constant 0 : index
      %c0_12 = arith.constant 0 : index
      %15 = vector.load %arg5[%c0_11, %c0_12] : memref<1x128xf32, #tpu.memory_space<vmem>>, vector<1x128xf32>
      %c0_13 = arith.constant 0 : index
      %c0_14 = arith.constant 0 : index
      %16 = vector.load %arg4[%c0_13, %c0_14] : memref<1x128xf32, #tpu.memory_space<vmem>>, vector<1x128xf32>
      tpu.vector_store %arg4[%c0_13, %c0_14], %15 {strides = array<i32>} : memref<1x128xf32, #tpu.memory_space<vmem>>, vector<1x128xf32>,
    } else {
    }
    return
  }
  func.func @transform_0(%arg0: i32, %arg1: i32) -> (i32, i32) {
    %c0_i32 = arith.constant 0 : i32
    %c0_i32_0 = arith.constant 0 : i32
    return %arg1, %c0_i32 : i32, i32
  }
  func.func @transform_1(%arg0: i32, %arg1: i32) -> (i32, i32) {
    %c0_i32 = arith.constant 0 : i32
    %c0_i32_0 = arith.constant 0 : i32
    return %c0_i32, %arg0 : i32, i32
  }
  func.func @transform_2(%arg0: i32, %arg1: i32) -> (i32, i32) {
    %c0_i32 = arith.constant 0 : i32
    %c0_i32_0 = arith.constant 0 : i32
    return %c0_i32, %arg0 : i32, i32
  }
}

</mosaic_0001>

<llo_original>
// kernel: tpu_custom_call.1
$region0: #{tpu_custom_call.1}
  #allocation0 [shape = 'u32[]', space=smem, size = 0x4, offset = 0x4, fixed_abs, tag = 'smem constant byte address 0x4 - core index']
  #allocation1 [shape = 'u32[144,128]{1,0:T(1,128)}', space=vmem, size = 0x12000, scoped, tag = 'internal scratch']
  #allocation2 [shape = 'f32[1,128]{1,0:T(1,128)}', space=vmem, size = 0x200, scoped, tag = 'scratch operand']
  %s0 = inlined_call_operand.hbm [shape: f32[128,128], index: 0, kind: input, shape index: {}]
  %s1 = inlined_call_operand.hbm [shape: f32[128,128], index: 1, kind: input, shape index: {}]
  %s2 = inlined_call_operand.hbm [shape: f32[1,128], index: 2, kind: output, shape index: {}]
  %s3 = sld [smem:[#allocation0]]
  $region34: #{tpu_custom_call.1} parent=0
    _
  %s5 = ssub.s32 1, %s3
  %s6 = scalar_select 0, %s5, %s3
  $region1: #{tpu_custom_call.1} parent=0
    #allocation3 [shape = 'u8[65536]{0}', space=vmem, size = 0x10000, scoped, tag = 'input window, operand 0, single buffered']
    #allocation4 [shape = 's32[1]{0}', space=sflag, size = 0x4, scoped, tag = 'scoped memory for tpu_custom_call.1']
    #allocation5 [shape = 's32[1]{0}', space=sflag, size = 0x4, scoped, tag = 'scoped memory for tpu_custom_call.1']
    #allocation6 [shape = 'u8[65536]{0}', space=vmem, size = 0x10000, scoped, tag = 'input window, operand 1, single buffered']
    #allocation7 [shape = 's32[1]{0}', space=sflag, size = 0x4, scoped, tag = 'scoped memory for tpu_custom_call.1']
    #allocation8 [shape = 'u8[512]{0}', space=vmem, size = 0x400, scoped, tag = 'output window, operand 0, single buffered']
    %7 = vsyncpa [#allocation4], 0
    %8 = vsyncpa [#allocation7], 0
    %9 = vsyncpa [#allocation5], 0
    // Predicated region
    $region2: #{tpu_custom_call.1} parent=1 // pred_check
      _
    $region3: #{tpu_custom_call.1} parent=1 // pred_check_branch
      %11 = sbr.rel (0) target = $region5
    $region4: #{tpu_custom_call.1} parent=1 // pred_region
      %s13 = ssub.s32 2048, 2048
      %14 = vsyncadd [#allocation4], %s13
      %s15 = sshll.u32 [#allocation3], 4
      %s16 = int_to_ptr.vmem [resolvable:$true] %s15
      %21 = dma.hbm_to_vmem [thread:$0]  %s0, 2048, %s16, [#allocation4], 128, 128, 8
    $region5: #{tpu_custom_call.1} parent=1 // pred_fallthru
      _
    // Predicated region
    $region6: #{tpu_custom_call.1} parent=1 // pred_check
      _
    $region7: #{tpu_custom_call.1} parent=1 // pred_check_branch
      %23 = sbr.rel (0) target = $region9
    $region8: #{tpu_custom_call.1} parent=1 // pred_region
      %s25 = ssub.s32 2048, 2048
      %26 = vsyncadd [#allocation7], %s25
      %s27 = sshll.u32 [#allocation6], 4
      %s28 = int_to_ptr.vmem [resolvable:$true] %s27
      %33 = dma.hbm_to_vmem [thread:$0]  %s1, 2048, %s28, [#allocation7], 128, 128, 8
    $region9: #{tpu_custom_call.1} parent=1 // pred_fallthru
      _
    // Predicated region
    $region10: #{tpu_custom_call.1} parent=1 // pred_check
      _
    $region11: #{tpu_custom_call.1} parent=1 // pred_check_branch
      %35 = sbr.rel (0) target = $region13
    $region12: #{tpu_custom_call.1} parent=1 // pred_region
      %36 = dma.done [#allocation4], 2048
    $region13: #{tpu_custom_call.1} parent=1 // pred_fallthru
      _
    // Predicated region
    $region14: #{tpu_custom_call.1} parent=1 // pred_check
      _
    $region15: #{tpu_custom_call.1} parent=1 // pred_check_branch
      %38 = sbr.rel (0) target = $region17
    $region16: #{tpu_custom_call.1} parent=1 // pred_region
      %39 = dma.done [#allocation7], 2048
    $region17: #{tpu_custom_call.1} parent=1 // pred_fallthru
      _
    %p40 = scmp.eq.s32.totalorder 0, 0
    // Predicated region
    $region18: #{tpu_custom_call.1} parent=1 // pred_check
      %p41 = pneg %p40
    $region19: #{tpu_custom_call.1} parent=1 // pred_check_branch
      %43 = sbr.rel (%p41) target = $region21
    $region20: #{tpu_custom_call.1} parent=1 // pred_region
      %44 = vst [vmem:[#allocation2] sm:$0x1] 0.0
    $region21: #{tpu_custom_call.1} parent=1 // pred_fallthru
      _
    %v45 = vld [vmem:[#allocation3] sm:$0xff]
    %v46 = vld [vmem:[#allocation3 + $0x8] sm:$0xff]
    %v47 = vld [vmem:[#allocation3 + $0x10] sm:$0xff]
    %v48 = vld [vmem:[#allocation3 + $0x18] sm:$0xff]
    %v49 = vld [vmem:[#allocation3 + $0x20] sm:$0xff]
    %v50 = vld [vmem:[#allocation3 + $0x28] sm:$0xff]
    %v51 = vld [vmem:[#allocation3 + $0x30] sm:$0xff]
    %v52 = vld [vmem:[#allocation3 + $0x38] sm:$0xff]
    %v53 = vld [vmem:[#allocation3 + $0x40] sm:$0xff]
    %v54 = vld [vmem:[#allocation3 + $0x48] sm:$0xff]
    %v55 = vld [vmem:[#allocation3 + $0x50] sm:$0xff]
    %v56 = vld [vmem:[#allocation3 + $0x58] sm:$0xff]
    %v57 = vld [vmem:[#allocation3 + $0x60] sm:$0xff]
    %v58 = vld [vmem:[#allocation3 + $0x68] sm:$0xff]
    %v59 = vld [vmem:[#allocation3 + $0x70] sm:$0xff]
    %v60 = vld [vmem:[#allocation3 + $0x78] sm:$0xff]
    %v61 = vld [vmem:[#allocation6] sm:$0xff]
    %v62 = vld [vmem:[#allocation6 + $0x8] sm:$0xff]
    %v63 = vld [vmem:[#allocation6 + $0x10] sm:$0xff]
    %v64 = vld [vmem:[#allocation6 + $0x18] sm:$0xff]
    %v65 = vld [vmem:[#allocation6 + $0x20] sm:$0xff]
    %v66 = vld [vmem:[#allocation6 + $0x28] sm:$0xff]
    %v67 = vld [vmem:[#allocation6 + $0x30] sm:$0xff]
    %v68 = vld [vmem:[#allocation6 + $0x38] sm:$0xff]
    %v69 = vld [vmem:[#allocation6 + $0x40] sm:$0xff]
    %v70 = vld [vmem:[#allocation6 + $0x48] sm:$0xff]
    %v71 = vld [vmem:[#allocation6 + $0x50] sm:$0xff]
    %v72 = vld [vmem:[#allocation6 + $0x58] sm:$0xff]
    %v73 = vld [vmem:[#allocation6 + $0x60] sm:$0xff]
    %v74 = vld [vmem:[#allocation6 + $0x68] sm:$0xff]
    %v75 = vld [vmem:[#allocation6 + $0x70] sm:$0xff]
    %v76 = vld [vmem:[#allocation6 + $0x78] sm:$0xff]
    %77 = vmatprep.subr.mxu0 0.0
    %78 = vmatpush1.msra.mxu0 %v61
    %79 = vmatprep.subr.mxu0 0.0
    %80 = vmatpush1.msra.mxu0 %v62
    %81 = vmatprep.subr.mxu0 0.0
    %82 = vmatpush1.msra.mxu0 %v63
    %83 = vmatprep.subr.mxu0 0.0
    %84 = vmatpush1.msra.mxu0 %v64
    %85 = vmatprep.subr.mxu0 0.0
    %86 = vmatpush1.msra.mxu0 %v65
    %87 = vmatprep.subr.mxu0 0.0
    %88 = vmatpush1.msra.mxu0 %v66
    %89 = vmatprep.subr.mxu0 0.0
    %90 = vmatpush1.msra.mxu0 %v67
    %91 = vmatprep.subr.mxu0 0.0
    %92 = vmatpush1.msra.mxu0 %v68
    %93 = vmatprep.subr.mxu0 0.0
    %94 = vmatpush1.msra.mxu0 %v69
    %95 = vmatprep.subr.mxu0 0.0
    %96 = vmatpush1.msra.mxu0 %v70
    %97 = vmatprep.subr.mxu0 0.0
    %98 = vmatpush1.msra.mxu0 %v71
    %99 = vmatprep.subr.mxu0 0.0
    %100 = vmatpush1.msra.mxu0 %v72
    %101 = vmatprep.subr.mxu0 0.0
    %102 = vmatpush1.msra.mxu0 %v73
    %103 = vmatprep.subr.mxu0 0.0
    %104 = vmatpush1.msra.mxu0 %v74
    %105 = vmatprep.subr.mxu0 0.0
    %106 = vmatpush1.msra.mxu0 %v75
    %107 = vmatprep.subr.mxu0 0.0
    %108 = vmatpush1.msra.mxu0 %v76
    %109 = vmatprep.subr.mxu0 0.0
    %110 = vmatpush1.msra.mxu0 0.0
    %111 = vmatprep.subr.mxu0 0.0
    %112 = vmatpush1.msra.mxu0 0.0
    %113 = vmatprep.subr.mxu0 0.0
    %114 = vmatpush1.msra.mxu0 0.0
    %115 = vmatprep.subr.mxu0 0.0
    %116 = vmatpush1.msra.mxu0 0.0
    %117 = vmatprep.subr.mxu0 0.0
    %118 = vmatpush1.msra.mxu0 0.0
    %119 = vmatprep.subr.mxu0 0.0
    %120 = vmatpush1.msra.mxu0 0.0
    %121 = vmatprep.subr.mxu0 0.0
    %122 = vmatpush1.msra.mxu0 0.0
    %123 = vmatprep.subr.mxu0 0.0
    %124 = vmatpush1.msra.mxu0 0.0
    %125 = vmatprep.subr.mxu0 0.0
    %126 = vmatpush1.msra.mxu0 0.0
    %127 = vmatprep.subr.mxu0 0.0
    %128 = vmatpush1.msra.mxu0 0.0
    %129 = vmatprep.subr.mxu0 0.0
    %130 = vmatpush1.msra.mxu0 0.0
    %131 = vmatprep.subr.mxu0 0.0
    %132 = vmatpush1.msra.mxu0 0.0
    %133 = vmatprep.subr.mxu0 0.0
    %134 = vmatpush1.msra.mxu0 0.0
    %135 = vmatprep.subr.mxu0 0.0
    %136 = vmatpush1.msra.mxu0 0.0
    %137 = vmatprep.subr.mxu0 0.0
    %138 = vmatpush1.msra.mxu0 0.0
    %139 = vmatprep.subr.mxu0 0.0
    %140 = vmatpush1.msra.mxu0 0.0
    %141 = vmatprep.mubr.f32.mxu0 0.0
    %142 = vmatmul.mubr.f32.gmra.mrb[0].mxu0 %v45
    %v143 = vpop.f32.mrb[0].mxu0
    %v144 = vadd.f32 0.0, %v143
    %v145 = vpop.f32.mrb[0].mxu0
    %146 = vmatprep.mubr.f32.mxu0 0.0
    %147 = vmatmul.mubr.f32.gmra.mrb[0].mxu0 %v46
    %v148 = vpop.f32.mrb[0].mxu0
    %v149 = vadd.f32 0.0, %v148
    %v150 = vpop.f32.mrb[0].mxu0
    %151 = vmatprep.mubr.f32.mxu0 0.0
    %152 = vmatmul.mubr.f32.gmra.mrb[0].mxu0 %v47
    %v153 = vpop.f32.mrb[0].mxu0
    %v154 = vadd.f32 0.0, %v153
    %v155 = vpop.f32.mrb[0].mxu0
    %156 = vmatprep.mubr.f32.mxu0 0.0
    %157 = vmatmul.mubr.f32.gmra.mrb[0].mxu0 %v48
    %v158 = vpop.f32.mrb[0].mxu0
    %v159 = vadd.f32 0.0, %v158
    %v160 = vpop.f32.mrb[0].mxu0
    %161 = vmatprep.mubr.f32.mxu0 0.0
    %162 = vmatmul.mubr.f32.gmra.mrb[0].mxu0 %v49
    %v163 = vpop.f32.mrb[0].mxu0
    %v164 = vadd.f32 0.0, %v163
    %v165 = vpop.f32.mrb[0].mxu0
    %166 = vmatprep.mubr.f32.mxu0 0.0
    %167 = vmatmul.mubr.f32.gmra.mrb[0].mxu0 %v50
    %v168 = vpop.f32.mrb[0].mxu0
    %v169 = vadd.f32 0.0, %v168
    %v170 = vpop.f32.mrb[0].mxu0
    %171 = vmatprep.mubr.f32.mxu0 0.0
    %172 = vmatmul.mubr.f32.gmra.mrb[0].mxu0 %v51
    %v173 = vpop.f32.mrb[0].mxu0
    %v174 = vadd.f32 0.0, %v173
    %v175 = vpop.f32.mrb[0].mxu0
    %176 = vmatprep.mubr.f32.mxu0 0.0
    %177 = vmatmul.mubr.f32.gmra.mrb[0].mxu0 %v52
    %v178 = vpop.f32.mrb[0].mxu0
    %v179 = vadd.f32 0.0, %v178
    %v180 = vpop.f32.mrb[0].mxu0
    %181 = vmatprep.mubr.f32.mxu0 0.0
    %182 = vmatmul.mubr.f32.gmra.mrb[0].mxu0 %v53
    %v183 = vpop.f32.mrb[0].mxu0
    %v184 = vadd.f32 0.0, %v183
    %v185 = vpop.f32.mrb[0].mxu0
    %186 = vmatprep.mubr.f32.mxu0 0.0
    %187 = vmatmul.mubr.f32.gmra.mrb[0].mxu0 %v54
    %v188 = vpop.f32.mrb[0].mxu0
    %v189 = vadd.f32 0.0, %v188
    %v190 = vpop.f32.mrb[0].mxu0
    %191 = vmatprep.mubr.f32.mxu0 0.0
    %192 = vmatmul.mubr.f32.gmra.mrb[0].mxu0 %v55
    %v193 = vpop.f32.mrb[0].mxu0
    %v194 = vadd.f32 0.0, %v193
    %v195 = vpop.f32.mrb[0].mxu0
    %196 = vmatprep.mubr.f32.mxu0 0.0
    %197 = vmatmul.mubr.f32.gmra.mrb[0].mxu0 %v56
    %v198 = vpop.f32.mrb[0].mxu0
    %v199 = vadd.f32 0.0, %v198
    %v200 = vpop.f32.mrb[0].mxu0
    %201 = vmatprep.mubr.f32.mxu0 0.0
    %202 = vmatmul.mubr.f32.gmra.mrb[0].mxu0 %v57
    %v203 = vpop.f32.mrb[0].mxu0
    %v204 = vadd.f32 0.0, %v203
    %v205 = vpop.f32.mrb[0].mxu0
    %206 = vmatprep.mubr.f32.mxu0 0.0
    %207 = vmatmul.mubr.f32.gmra.mrb[0].mxu0 %v58
    %v208 = vpop.f32.mrb[0].mxu0
    %v209 = vadd.f32 0.0, %v208
    %v210 = vpop.f32.mrb[0].mxu0
    %211 = vmatprep.mubr.f32.mxu0 0.0
    %212 = vmatmul.mubr.f32.gmra.mrb[0].mxu0 %v59
    %v213 = vpop.f32.mrb[0].mxu0
    %v214 = vadd.f32 0.0, %v213
    %v215 = vpop.f32.mrb[0].mxu0
    %216 = vmatprep.mubr.f32.mxu0 0.0
    %217 = vmatmul.mubr.f32.gmra.mrb[0].mxu0 %v60
    %v218 = vpop.f32.mrb[0].mxu0
    %v219 = vadd.f32 0.0, %v218
    %v220 = vpop.f32.mrb[0].mxu0
    %221 = vdwg.mxu0
    %v222 = vld [vmem:[#allocation2] sm:$0x1]
    %v223 = vmul.f32 %v144, %v144
    %v224 = vmul.f32 %v149, %v149
    %v225 = vmul.f32 %v154, %v154
    %v226 = vmul.f32 %v159, %v159
    %v227 = vmul.f32 %v164, %v164
    %v228 = vmul.f32 %v169, %v169
    %v229 = vmul.f32 %v174, %v174
    %v230 = vmul.f32 %v179, %v179
    %v231 = vmul.f32 %v184, %v184
    %v232 = vmul.f32 %v189, %v189
    %v233 = vmul.f32 %v194, %v194
    %v234 = vmul.f32 %v199, %v199
    %v235 = vmul.f32 %v204, %v204
    %v236 = vmul.f32 %v209, %v209
    %v237 = vmul.f32 %v214, %v214
    %v238 = vmul.f32 %v219, %v219
    %v239 = vadd.f32 %v223, %v224
    %v240 = vadd.f32 %v239, %v225
    %v241 = vadd.f32 %v240, %v226
    %v242 = vadd.f32 %v241, %v227
    %v243 = vadd.f32 %v242, %v228
    %v244 = vadd.f32 %v243, %v229
    %v245 = vadd.f32 %v244, %v230
    %v246 = vadd.f32 %v245, %v231
    %v247 = vadd.f32 %v246, %v232
    %v248 = vadd.f32 %v247, %v233
    %v249 = vadd.f32 %v248, %v234
    %v250 = vadd.f32 %v249, %v235
    %v251 = vadd.f32 %v250, %v236
    %v252 = vadd.f32 %v251, %v237
    %v253 = vadd.f32 %v252, %v238
    %v254 = vrot.slane %v253, 4
    %v255 = vadd.f32 %v253, %v254
    %v256 = vrot.slane %v255, 2
    %v257 = vadd.f32 %v255, %v256
    %v258 = vrot.slane %v257, 1
    %v259 = vadd.f32 %v257, %v258
    %v260 = vadd.f32 %v222, %v259
    %261 = vst [vmem:[#allocation2] sm:$0x1] %v260
    // Predicated region
    $region22: #{tpu_custom_call.1} parent=1 // pred_check
      %p262 = pneg %p40
    $region23: #{tpu_custom_call.1} parent=1 // pred_check_branch
      %264 = sbr.rel (%p262) target = $region25
    $region24: #{tpu_custom_call.1} parent=1 // pred_region
      %v265 = vld [vmem:[#allocation2] sm:$0x1]
      %266 = vst [vmem:[#allocation8] sm:$0x1] %v265
    $region25: #{tpu_custom_call.1} parent=1 // pred_fallthru
      _
    // Predicated region
    $region26: #{tpu_custom_call.1} parent=1 // pred_check
      _
    $region27: #{tpu_custom_call.1} parent=1 // pred_check_branch
      %268 = sbr.rel (0) target = $region29
    $region28: #{tpu_custom_call.1} parent=1 // pred_region
      %s270 = ssub.s32 16, 16
      %271 = vsyncadd [#allocation5], %s270
      %s273 = sshll.u32 [#allocation8], 4
      %s274 = int_to_ptr.vmem [resolvable:$true] %s273
      %276 = dma.vmem_to_hbm [thread:$0]  %s274, 16, %s2, [#allocation5]
    $region29: #{tpu_custom_call.1} parent=1 // pred_fallthru
      _
    // Predicated region
    $region30: #{tpu_custom_call.1} parent=1 // pred_check
      _
    $region31: #{tpu_custom_call.1} parent=1 // pred_check_branch
      %278 = sbr.rel (0) target = $region33
    $region32: #{tpu_custom_call.1} parent=1 // pred_region
      %279 = dma.done [#allocation5], 16
    $region33: #{tpu_custom_call.1} parent=1 // pred_fallthru
      _
    %280 = vsyncpa [#allocation4], 1
    %281 = vsyncpa [#allocation7], 1
    %282 = vsyncpa [#allocation5], 1

</llo_original>
